<compile_context>
chip_gen: v7x
topology: tpu7x:2x2x1
jax: 0.10.0
libtpu: 0.0.40
codegen_flags: <defaults>
</compile_context>

<pallas_src>
import functools

import jax
import jax.numpy as jnp
from jax.experimental import pallas as pl
from jax.experimental.pallas import tpu as pltpu


def _round_up(n, m):
    return ((n + m - 1) // m) * m


# ----------------------------------------------------------------------------
# Kernels
# ----------------------------------------------------------------------------
def _mse_single_block_kernel(x_ref, w_ref, b_ref, u_ref, o_ref, *, inv_b):
    """Tiny-batch path: whole problem in one VMEM block; scalar result to SMEM."""
    y = jnp.dot(x_ref[...], w_ref[...], preferred_element_type=jnp.float32)
    y = y + b_ref[...].astype(jnp.float32)          # (B, D_out) + (1, D_out)
    d = y - u_ref[...].astype(jnp.float32)          # residual
    # mean over batch of per-row squared L2 norm == sum(d*d) * (1/B)
    o_ref[0, 0] = jnp.sum(d * d) * inv_b


def _mse_tiled_kernel(x_ref, w_ref, b_ref, u_ref, o_ref, acc_ref, *,
                      inv_b, rows_total, batch_tile, sub_tile, need_mask):
    """Batch-tiled path.

    Each grid step streams a (batch_tile, D_in)/(batch_tile, D_out) block of
    x/u (auto double-buffered by BlockSpec), walks it in `sub_tile`-row
    sub-chunks (matmul + residual), and accumulates d*d into a lane-resident
    VMEM f32 accumulator.  The only cross-lane reduce and scalar SMEM write
    happen once, in the finalize pl.when.
    """
    i = pl.program_id(0)

    @pl.when(i == 0)
    def _init():
        acc_ref[...] = jnp.zeros_like(acc_ref)

    # Hoist resident operand loads out of the (unrolled) sub-chunk loop.
    w = w_ref[...]
    b = b_ref[...].astype(jnp.float32)
    row_base = i * batch_tile
    n_sub = batch_tile // sub_tile

    def body(c, carry):
        start = pl.multiple_of(c * sub_tile, sub_tile)
        x_c = x_ref[pl.ds(start, sub_tile), :]
        u_c = u_ref[pl.ds(start, sub_tile), :].astype(jnp.float32)
        y = jnp.dot(x_c, w, preferred_element_type=jnp.float32) + b
        d = y - u_c
        if need_mask:
            # Zero residuals of rows past the global batch (ragged last tile);
            # the OOB region of the block holds unspecified data.
            rows = (row_base + start
                    + jax.lax.broadcasted_iota(jnp.int32, d.shape, 0))
            d = jnp.where(rows < rows_total, d, 0.0)
        acc_ref[...] += d * d                       # pure VPU accumulate
        return carry

    jax.lax.fori_loop(0, n_sub, body, 0, unroll=True)

    @pl.when(i == pl.num_programs(0) - 1)
    def _finalize():
        # Single cross-lane/sublane reduce per kernel; divide by *global* B.
        o_ref[0, 0] = jnp.sum(acc_ref[...]) * inv_b


# ----------------------------------------------------------------------------
# Wrapper
# ----------------------------------------------------------------------------
def _auto_batch_tile(B, d_in, d_out, itemsize, sub_tile,
                     vmem_budget_bytes=12 << 20):
    """Largest batch tile whose lane-padded, double-buffered x/u streaming
    blocks fit in ~12 MiB of VMEM (safe under the 32 MiB scoped default on
    v6e/v7x), rounded to a multiple of sub_tile."""
    lane = 128
    padded_row_bytes = (pl.cdiv(d_in, lane) + pl.cdiv(d_out, lane)) * lane * itemsize
    max_rows = (vmem_budget_bytes // (2 * padded_row_bytes)) // sub_tile * sub_tile
    max_rows = max(max_rows, sub_tile)
    return min(max_rows, _round_up(B, sub_tile))


def mse_objective(x, w, b, u_target, *, batch_tile=None, sub_tile=512,
                  small_batch_rows=1024):
    """Returns scalar: mean_b || x @ w + b - u_target ||_2^2 (norm over dim=1)."""
    B, D_in = x.shape
    D_out = w.shape[1]
    b2 = b.reshape(1, D_out)
    inv_b = float(1.0 / B)  # compile-time constant multiply, global batch size

    itemsize = jnp.dtype(x.dtype).itemsize
    cost = pl.CostEstimate(
        flops=2 * B * D_in * D_out + 3 * B * D_out,
        transcendentals=0,
        bytes_accessed=(x.size * itemsize
                        + u_target.size * jnp.dtype(u_target.dtype).itemsize
                        + w.size * jnp.dtype(w.dtype).itemsize
                        + b.size * jnp.dtype(b.dtype).itemsize + 4),
    )

    vmem = pltpu.MemorySpace.VMEM
    smem = pltpu.MemorySpace.SMEM

    if B < sub_tile or B <= small_batch_rows:
        # Tiny problem: gridless call, everything in one VMEM block, no grid
        # step overhead, scalar result straight to SMEM.
        out = pl.pallas_call(
            functools.partial(_mse_single_block_kernel, inv_b=inv_b),
            out_shape=jax.ShapeDtypeStruct((1, 1), jnp.float32),
            in_specs=[pl.BlockSpec(memory_space=vmem)] * 4,
            out_specs=pl.BlockSpec(memory_space=smem),
            cost_estimate=cost,
        )(x, w, b2, u_target)
        return out[0, 0]

    assert sub_tile % 8 == 0, "sub_tile must be a multiple of 8"
    if batch_tile is None:
        batch_tile = _auto_batch_tile(B, D_in, D_out, itemsize, sub_tile)
    batch_tile = min(batch_tile, _round_up(B, sub_tile))
    assert batch_tile % sub_tile == 0, "batch_tile must be a multiple of sub_tile"
    need_mask = (B % batch_tile) != 0
    grid = (pl.cdiv(B, batch_tile),)

    out = pl.pallas_call(
        functools.partial(_mse_tiled_kernel, inv_b=inv_b, rows_total=B,
                          batch_tile=batch_tile, sub_tile=sub_tile,
                          need_mask=need_mask),
        out_shape=jax.ShapeDtypeStruct((1, 1), jnp.float32),
        grid=grid,
        in_specs=[
            pl.BlockSpec((batch_tile, D_in), lambda i: (i, 0)),   # x tile
            pl.BlockSpec((D_in, D_out), lambda i: (0, 0)),        # W resident
            pl.BlockSpec((1, D_out), lambda i: (0, 0)),           # b resident
            pl.BlockSpec((batch_tile, D_out), lambda i: (i, 0)),  # u tile
        ],
        out_specs=pl.BlockSpec(memory_space=smem),
        scratch_shapes=[pltpu.VMEM((sub_tile, D_out), jnp.float32)],
        compiler_params=pltpu.CompilerParams(
            # Reduction over batch tiles into a shared accumulator -> arbitrary.
            dimension_semantics=("arbitrary",)),
        cost_estimate=cost,
    )(x, w, b2, u_target)
    return out[0, 0]


def mse_objective_ref(x, w, b, u_target):
    x = x.astype(jnp.float32)
    w = w.astype(jnp.float32)
    b = b.astype(jnp.float32)
    u_target = u_target.astype(jnp.float32)
    d = x @ w + b - u_target
    return jnp.mean(jnp.sum(d * d, axis=1))


# ----------------------------------------------------------------------------
# Demo / correctness check
# ----------------------------------------------------------------------------
if __name__ == "__main__":
    key = jax.random.PRNGKey(0)
    k_x, k_w, k_b, k_u, k_x2, k_u2 = jax.random.split(key, 6)

    D_in, D_out = 32, 16
    w = jax.random.normal(k_w, (D_in, D_out), dtype=jnp.float32) * 0.1
    b = jax.random.normal(k_b, (D_out,), dtype=jnp.float32) * 0.1

    # 1) Tiny batch -> gridless single-block path with SMEM scalar output.
    B_small = 8
    x_s = jax.random.normal(k_x, (B_small, D_in), dtype=jnp.float32)
    u_s = jax.random.normal(k_u, (B_small, D_out), dtype=jnp.float32)
    out_s = jax.block_until_ready(mse_objective(x_s, w, b, u_s))
    ref_s = mse_objective_ref(x_s, w, b, u_s)
    assert jnp.allclose(out_s, ref_s, rtol=1e-3, atol=1e-3), (out_s, ref_s)

    # 2) Ragged batch -> tiled path with cdiv grid + masked last tile.
    #    (Small tiles here only to exercise the tiled/masked code path with
    #    small shapes; production defaults auto-pick ~6K-row tiles.)
    B_big = 200
    x_b = jax.random.normal(k_x2, (B_big, D_in), dtype=jnp.float32)
    u_b = jax.random.normal(k_u2, (B_big, D_out), dtype=jnp.float32)
    out_b = jax.block_until_ready(
        mse_objective(x_b, w, b, u_b,
                      batch_tile=64, sub_tile=32, small_batch_rows=0))
    ref_b = mse_objective_ref(x_b, w, b, u_b)
    assert jnp.allclose(out_b, ref_b, rtol=1e-3, atol=1e-3), (out_b, ref_b)

    # 3) bf16-streamed inputs (mem-bound kernel -> ~2x roofline), f32 accumulate.
    x_h = x_b.astype(jnp.bfloat16)
    u_h = u_b.astype(jnp.bfloat16)
    w_h = w.astype(jnp.bfloat16)
    b_h = b.astype(jnp.bfloat16)
    out_h = jax.block_until_ready(
        mse_objective(x_h, w_h, b_h, u_h,
                      batch_tile=64, sub_tile=32, small_batch_rows=0))
    ref_h = mse_objective_ref(x_h, w_h, b_h, u_h)
    assert jnp.allclose(out_h, ref_h, rtol=2e-2, atol=2e-2), (out_h, ref_h)

    print("KERNEL_OK")
</pallas_src>

<mosaic_0001>
module attributes {stable_mosaic.version = 11 : i64} {
  func.func @_mse_single_block_kernel(%arg0: memref<8x32xf32, #tpu.memory_space<vmem>>, %arg1: memref<32x16xf32, #tpu.memory_space<vmem>>, %arg2: memref<1x16xf32, #tpu.memory_space<vmem>>, %arg3: memref<8x16xf32, #tpu.memory_space<vmem>>, %arg4: memref<1x1xf32, #tpu.memory_space<smem>>) attributes {dimension_semantics = [], scalar_prefetch = 0 : i64, scratch_operands = 0 : i64, tpu.core_type = #tpu.core_type<tc>} {
    %c0 = arith.constant 0 : index
    %c0_0 = arith.constant 0 : index
    %0 = vector.load %arg0[%c0, %c0_0] : memref<8x32xf32, #tpu.memory_space<vmem>>, vector<8x32xf32>
    %c0_1 = arith.constant 0 : index
    %c0_2 = arith.constant 0 : index
    %1 = vector.load %arg1[%c0_1, %c0_2] : memref<32x16xf32, #tpu.memory_space<vmem>>, vector<32x16xf32>
    %cst = arith.constant dense<0.000000e+00> : vector<8x16xf32>
    %2 = tpu.matmul %0, %1, %cst {dimension_numbers = #tpu.dot_dimension_numbers<[1], [0], [0], [1], [0, 0, 1, 1], [], []>} : vector<8x32xf32>, vector<32x16xf32>, vector<8x16xf32> -> vector<8x16xf32>
    %c0_3 = arith.constant 0 : index
    %c0_4 = arith.constant 0 : index
    %3 = vector.load %arg2[%c0_3, %c0_4] : memref<1x16xf32, #tpu.memory_space<vmem>>, vector<1x16xf32>
    %4 = vector.broadcast %3 : vector<1x16xf32> to vector<8x16xf32>
    %5 = arith.addf %2, %4 : vector<8x16xf32>
    %c0_5 = arith.constant 0 : index
    %c0_6 = arith.constant 0 : index
    %6 = vector.load %arg3[%c0_5, %c0_6] : memref<8x16xf32, #tpu.memory_space<vmem>>, vector<8x16xf32>
    %7 = arith.subf %5, %6 : vector<8x16xf32>
    %8 = arith.mulf %7, %7 : vector<8x16xf32>
    %9 = vector.shape_cast %8 : vector<8x16xf32> to vector<1x8x16xf32>
    %cst_7 = arith.constant dense<0.000000e+00> : vector<1xf32>
    %10 = vector.multi_reduction <add>, %9, %cst_7 [1, 2] : vector<1x8x16xf32> to vector<1xf32>
    %11 = vector.shape_cast %10 : vector<1xf32> to vector<1x1x1xf32>
    %12 = vector.extract %11[0, 0, 0] : f32 from vector<1x1x1xf32>
    %cst_8 = arith.constant 1.250000e-01 : f32
    %13 = arith.mulf %12, %cst_8 : f32
    %c0_9 = arith.constant 0 : index
    %c0_10 = arith.constant 0 : index
    %14 = memref.load %arg4[%c0_9, %c0_10] : memref<1x1xf32, #tpu.memory_space<smem>>
    memref.store %13, %arg4[%c0_9, %c0_10] : memref<1x1xf32, #tpu.memory_space<smem>>
    return
  }
}

</mosaic_0001>

<llo_original>
// kernel: tpu_custom_call.1
$region0: #{tpu_custom_call.1}
  #allocation0 [shape = 'u32[]', space=smem, size = 0x4, offset = 0x4, fixed_abs, tag = 'smem constant byte address 0x4 - core index']
  #allocation1 [shape = 'u32[144,128]{1,0:T(1,128)}', space=vmem, size = 0x12000, scoped, tag = 'internal scratch']
  %s0 = inlined_call_operand.vmem [shape: f32[8,32], index: 0, kind: input, shape index: {}]
  %s1 = inlined_call_operand.vmem [shape: f32[32,16], index: 1, kind: input, shape index: {}]
  %s2 = inlined_call_operand.vmem [shape: f32[1,16], index: 2, kind: input, shape index: {}]
  %s3 = inlined_call_operand.vmem [shape: f32[8,16], index: 3, kind: input, shape index: {}]
  %s4 = inlined_call_operand.hbm [shape: f32[1,1], index: 4, kind: output, shape index: {}]
  %s5 = sld [smem:[#allocation0]]
  $region26: #{tpu_custom_call.1} parent=0
    _
  %s7 = ssub.s32 1, %s5
  %s8 = scalar_select 0, %s7, %s5
  $region1: #{tpu_custom_call.1} parent=0
    #allocation2 [shape = 'u8[512]{0}', space=smem, size = 0x200, scoped, tag = 'output window, operand 0, single buffered']
    #allocation3 [shape = 's32[1]{0}', space=sflag, size = 0x4, scoped, tag = 'scoped memory for tpu_custom_call.1']
    %9 = vsyncpa [#allocation3], 0
    // Predicated region
    $region2: #{tpu_custom_call.1} parent=1 // pred_check
      _
    $region3: #{tpu_custom_call.1} parent=1 // pred_check_branch
      %11 = sbr.rel (0) target = $region5
    $region4: #{tpu_custom_call.1} parent=1 // pred_region
      _
    $region5: #{tpu_custom_call.1} parent=1 // pred_fallthru
      _
    // Predicated region
    $region6: #{tpu_custom_call.1} parent=1 // pred_check
      _
    $region7: #{tpu_custom_call.1} parent=1 // pred_check_branch
      %13 = sbr.rel (0) target = $region9
    $region8: #{tpu_custom_call.1} parent=1 // pred_region
      _
    $region9: #{tpu_custom_call.1} parent=1 // pred_fallthru
      _
    // Predicated region
    $region10: #{tpu_custom_call.1} parent=1 // pred_check
      _
    $region11: #{tpu_custom_call.1} parent=1 // pred_check_branch
      %15 = sbr.rel (0) target = $region13
    $region12: #{tpu_custom_call.1} parent=1 // pred_region
      _
    $region13: #{tpu_custom_call.1} parent=1 // pred_fallthru
      _
    // Predicated region
    $region14: #{tpu_custom_call.1} parent=1 // pred_check
      _
    $region15: #{tpu_custom_call.1} parent=1 // pred_check_branch
      %17 = sbr.rel (0) target = $region17
    $region16: #{tpu_custom_call.1} parent=1 // pred_region
      _
    $region17: #{tpu_custom_call.1} parent=1 // pred_fallthru
      _
    %v18 = vld [vmem:[%s0] sm:$0xff]
    %v19 = vld [vmem:[%s1] sm:$0xff]
    %v20 = vld [vmem:[%s1 + $0x8] sm:$0xff]
    %v21 = vld [vmem:[%s1 + $0x10] sm:$0xff]
    %v22 = vld [vmem:[%s1 + $0x18] sm:$0xff]
    %v23 = vld [vmem:[%s2] sm:$0x1]
    %v25 = vlaneseq
    %v26 = vshrl.u32 %v25, 7
    %v27 = vsub.s32 0, %v26
    %v28 = vrot.slane %v23, %v27
    %vm30 = vcmask 261120
    %v32 = vsel %vm30, %v18, 0
    %34 = vmatprep.subr.mxu0 0.0
    %35 = vmatpush1.msra.mxu0 %v19
    %36 = vmatprep.subr.mxu0 0.0
    %37 = vmatpush1.msra.mxu0 %v20
    %38 = vmatprep.subr.mxu0 0.0
    %39 = vmatpush1.msra.mxu0 %v21
    %40 = vmatprep.subr.mxu0 0.0
    %41 = vmatpush1.msra.mxu0 %v22
    %42 = vmatprep.subr.mxu0 0.0
    %43 = vmatpush1.msra.mxu0 0.0
    %44 = vmatprep.subr.mxu0 0.0
    %45 = vmatpush1.msra.mxu0 0.0
    %46 = vmatprep.subr.mxu0 0.0
    %47 = vmatpush1.msra.mxu0 0.0
    %48 = vmatprep.subr.mxu0 0.0
    %49 = vmatpush1.msra.mxu0 0.0
    %50 = vmatprep.subr.mxu0 0.0
    %51 = vmatpush1.msra.mxu0 0.0
    %52 = vmatprep.subr.mxu0 0.0
    %53 = vmatpush1.msra.mxu0 0.0
    %54 = vmatprep.subr.mxu0 0.0
    %55 = vmatpush1.msra.mxu0 0.0
    %56 = vmatprep.subr.mxu0 0.0
    %57 = vmatpush1.msra.mxu0 0.0
    %58 = vmatprep.subr.mxu0 0.0
    %59 = vmatpush1.msra.mxu0 0.0
    %60 = vmatprep.subr.mxu0 0.0
    %61 = vmatpush1.msra.mxu0 0.0
    %62 = vmatprep.subr.mxu0 0.0
    %63 = vmatpush1.msra.mxu0 0.0
    %64 = vmatprep.subr.mxu0 0.0
    %65 = vmatpush1.msra.mxu0 0.0
    %66 = vmatprep.subr.mxu0 0.0
    %67 = vmatpush1.msra.mxu0 0.0
    %68 = vmatprep.subr.mxu0 0.0
    %69 = vmatpush1.msra.mxu0 0.0
    %70 = vmatprep.subr.mxu0 0.0
    %71 = vmatpush1.msra.mxu0 0.0
    %72 = vmatprep.subr.mxu0 0.0
    %73 = vmatpush1.msra.mxu0 0.0
    %74 = vmatprep.subr.mxu0 0.0
    %75 = vmatpush1.msra.mxu0 0.0
    %76 = vmatprep.subr.mxu0 0.0
    %77 = vmatpush1.msra.mxu0 0.0
    %78 = vmatprep.subr.mxu0 0.0
    %79 = vmatpush1.msra.mxu0 0.0
    %80 = vmatprep.subr.mxu0 0.0
    %81 = vmatpush1.msra.mxu0 0.0
    %82 = vmatprep.subr.mxu0 0.0
    %83 = vmatpush1.msra.mxu0 0.0
    %84 = vmatprep.subr.mxu0 0.0
    %85 = vmatpush1.msra.mxu0 0.0
    %86 = vmatprep.subr.mxu0 0.0
    %87 = vmatpush1.msra.mxu0 0.0
    %88 = vmatprep.subr.mxu0 0.0
    %89 = vmatpush1.msra.mxu0 0.0
    %90 = vmatprep.subr.mxu0 0.0
    %91 = vmatpush1.msra.mxu0 0.0
    %92 = vmatprep.subr.mxu0 0.0
    %93 = vmatpush1.msra.mxu0 0.0
    %94 = vmatprep.subr.mxu0 0.0
    %95 = vmatpush1.msra.mxu0 0.0
    %96 = vmatprep.subr.mxu0 0.0
    %97 = vmatpush1.msra.mxu0 0.0
    %98 = vmatprep.mubr.f32.mxu0 0.0
    %99 = vmatmul.mubr.f32.gmra.mrb[0].mxu0 %v32
    %v100 = vpop.f32.mrb[0].mxu0
    %v101 = vadd.f32 %v28, %v100
    %v102 = vpop.f32.mrb[0].mxu0
    %103 = vdwg.mxu0
    %v104 = vld [vmem:[%s3] sm:$0xff]
    %v105 = vsub.f32 %v101, %v104
    %v106 = vmul.f32 %v105, %v105
    %vm107 = vcmask 130048
    %v108 = vsel %vm107, %v106, 0.0
    %109 = vadd.xlane.f32.xlu0 %v108
    %v110 = vpop.xlane.xlu0 %109
    %v111 = vrot.slane %v110, 4
    %v112 = vadd.f32 %v110, %v111
    %v113 = vrot.slane %v112, 2
    %v114 = vadd.f32 %v112, %v113
    %v115 = vrot.slane %v114, 1
    %v116 = vadd.f32 %v114, %v115
    %s117 = vtos %v116
    %s118 = smul.f32 %s117, 0.125
    %s119 = scalar_lea.smem [#allocation2], 0
    %120 = sst [smem:[%s119]] %s118
    // Predicated region
    $region18: #{tpu_custom_call.1} parent=1 // pred_check
      _
    $region19: #{tpu_custom_call.1} parent=1 // pred_check_branch
      %122 = sbr.rel (0) target = $region21
    $region20: #{tpu_custom_call.1} parent=1 // pred_region
      %s124 = ssub.s32 16, 16
      %125 = vsyncadd [#allocation3], %s124
      %128 = dma.smem_to_hbm [#allocation2], 16, %s4, [#allocation3]
    $region21: #{tpu_custom_call.1} parent=1 // pred_fallthru
      _
    // Predicated region
    $region22: #{tpu_custom_call.1} parent=1 // pred_check
      _
    $region23: #{tpu_custom_call.1} parent=1 // pred_check_branch
      %130 = sbr.rel (0) target = $region25
    $region24: #{tpu_custom_call.1} parent=1 // pred_region
      %131 = dma.done [#allocation3], 16
    $region25: #{tpu_custom_call.1} parent=1 // pred_fallthru
      _
    %132 = sfence
    %133 = vsyncpa [#allocation3], 1

</llo_original>
